<compile_context>
chip_gen: v6e
topology: v6e:2x2x1
jax: 0.10.0
libtpu: 0.0.40
codegen_flags: <defaults>
</compile_context>

<pallas_src>
import jax
import jax.numpy as jnp
from jax.experimental import pallas as pl
from jax.experimental.pallas import tpu as pltpu


def _round_up(x, m):
    return ((x + m - 1) // m) * m


# ----------------------------------------------------------------------------
# Pallas kernel: depthwise 3x3 / stride-2 conv on column-deinterleaved,
# row-folded input.
#   xef_ref, xof_ref : (1, CT, Ho+1, 2*Wc) VMEM
#       even-column / odd-column slabs of the zero-padded input; folded row r
#       holds padded row 2r in lanes [0, Wc) and padded row 2r+1 in [Wc, 2*Wc).
#   w_ref : (9, C)  SMEM   spectral-normalized taps, k = kh*3 + kw
#   b_ref : (1, C)  SMEM   bias
#   o_ref : (1, CT, Ho, Wo)
# out[n, c, oh, ow] = b[c] + sum_{kh,kw} x_pad[n, c, 2*oh+kh, 2*ow+kw] * w[kh,kw,c]
# ----------------------------------------------------------------------------
def _dwconv_s2_kernel(xef_ref, xof_ref, w_ref, b_ref, o_ref):
    ct_idx = pl.program_id(1)
    CT = o_ref.shape[1]
    Ho = o_ref.shape[2]
    Wo = o_ref.shape[3]
    Wc = xef_ref.shape[3] // 2
    f32 = jnp.float32

    for c in range(CT):                      # static unroll over the channel tile
        cg = ct_idx * CT + c                 # global channel index into SMEM tables

        # kh = 0  (even padded row 2*oh  -> folded row oh, lanes [0, Wc))
        acc = w_ref[0, cg] * xef_ref[0, c, 0:Ho, 0:Wo].astype(f32)
        acc = acc + w_ref[1, cg] * xof_ref[0, c, 0:Ho, 0:Wo].astype(f32)
        acc = acc + w_ref[2, cg] * xef_ref[0, c, 0:Ho, 1:Wo + 1].astype(f32)
        # kh = 1  (odd padded row 2*oh+1 -> folded row oh, lanes [Wc, 2*Wc))
        acc = acc + w_ref[3, cg] * xef_ref[0, c, 0:Ho, Wc:Wc + Wo].astype(f32)
        acc = acc + w_ref[4, cg] * xof_ref[0, c, 0:Ho, Wc:Wc + Wo].astype(f32)
        acc = acc + w_ref[5, cg] * xef_ref[0, c, 0:Ho, Wc + 1:Wc + Wo + 1].astype(f32)
        # kh = 2  (even padded row 2*oh+2 -> folded row oh+1, lanes [0, Wc))
        acc = acc + w_ref[6, cg] * xef_ref[0, c, 1:Ho + 1, 0:Wo].astype(f32)
        acc = acc + w_ref[7, cg] * xof_ref[0, c, 1:Ho + 1, 0:Wo].astype(f32)
        acc = acc + w_ref[8, cg] * xef_ref[0, c, 1:Ho + 1, 1:Wo + 1].astype(f32)

        o_ref[0, c, :, :] = (acc + b_ref[0, cg]).astype(o_ref.dtype)


def _pick_channel_tile(C, n_fold_rows, fold_w, Ho, Wo, in_bytes, out_bytes,
                       budget_bytes=16 * 1024 * 1024, max_unroll=32):
    """Largest channel tile (<= max_unroll, divides C) whose double-buffered
    footprint (2 input slabs + output, x2 buffers) fits in budget_bytes."""
    for ct in range(min(C, max_unroll), 0, -1):
        if C % ct != 0:
            continue
        per_step = 2 * ct * (2 * n_fold_rows * fold_w * in_bytes + Ho * Wo * out_bytes)
        if per_step <= budget_bytes:
            return ct
    return 1


# ----------------------------------------------------------------------------
# Spectral norm (parameter setup, plain JAX): sigma = largest singular value of
# weight.reshape(out_channels, -1), estimated by power iteration (converged).
# This mirrors torch.nn.utils.parametrizations.spectral_norm applied to the conv
# weight; it is tiny (C x 9) parameter prep, not per-pixel work, so it stays in
# plain JAX rather than a Pallas kernel.
# ----------------------------------------------------------------------------
def _spectral_normalize(weight, key, n_iters=30, eps=1e-12):
    c_out = weight.shape[0]
    w_mat = weight.reshape(c_out, -1).astype(jnp.float32)          # (C, 9)
    u = jax.random.normal(key, (c_out,), dtype=jnp.float32)
    u = u / jnp.maximum(jnp.linalg.norm(u), eps)
    v = None
    for _ in range(n_iters):
        v = w_mat.T @ u
        v = v / jnp.maximum(jnp.linalg.norm(v), eps)
        u = w_mat @ v
        u = u / jnp.maximum(jnp.linalg.norm(u), eps)
    sigma = u @ (w_mat @ v)
    return weight / sigma


# ----------------------------------------------------------------------------
# Wrapper: NCHW in, NCHW out (matches nn.Conv2d forward semantics).
# ----------------------------------------------------------------------------
@jax.jit
def learned_downsample(x_nchw, weight_sn, bias):
    """x_nchw: (N, C, H, W); weight_sn: (C, 1, 3, 3); bias: (C,)."""
    N, C, H, W = x_nchw.shape
    Ho = (H - 1) // 2 + 1
    Wo = (W - 1) // 2 + 1

    # Width of each column-parity slab.  Align the lane axis to 128 only when the
    # extra zero-padding costs <= 12.5% HBM traffic; otherwise use the exact minimum
    # (the BlockSpec covers the full last dim, so no (8,128) divisibility is needed).
    Wc = _round_up(Wo + 1, 128)
    if (Wc - (Wo + 1)) * 8 > (Wo + 1):
        Wc = Wo + 1
    Hp = 2 * (Ho + 1)
    Wp = 2 * Wc

    # Single zero-pad in NCHW (conv padding=1 on top/left; extra bottom/right zeros
    # only supply the zeros edge taps read and make the parity split even-sized).
    xp = jnp.pad(x_nchw, ((0, 0), (0, 0), (1, Hp - H - 1), (1, Wp - W - 1)))

    # Column parity split: the only strided gather left in the wrapper (2 slabs).
    x_e = xp[:, :, :, 0::2]                       # (N, C, Hp, Wc)  even padded cols
    x_o = xp[:, :, :, 1::2]                       # (N, C, Hp, Wc)  odd  padded cols

    # Fold row pairs into the lane axis (contiguous reshape -> free, no HBM pass).
    x_ef = x_e.reshape(N, C, Ho + 1, 2 * Wc)
    x_of = x_o.reshape(N, C, Ho + 1, 2 * Wc)

    # Weight taps (9, C) + bias (1, C) -> SMEM scalar tables (long axis last).
    w9c = jnp.transpose(weight_sn[:, 0].reshape(C, 9), (1, 0)).astype(jnp.float32)
    b1c = bias.reshape(1, C).astype(jnp.float32)

    in_bytes = x_ef.dtype.itemsize
    out_bytes = x_nchw.dtype.itemsize
    CT = _pick_channel_tile(C, Ho + 1, 2 * Wc, Ho, Wo, in_bytes, out_bytes)

    xin_spec = pl.BlockSpec((1, CT, Ho + 1, 2 * Wc), lambda n, ct: (n, ct, 0, 0))
    smem_spec = pl.BlockSpec(memory_space=pltpu.MemorySpace.SMEM)
    out_spec = pl.BlockSpec((1, CT, Ho, Wo), lambda n, ct: (n, ct, 0, 0))

    bytes_accessed = int(2 * x_ef.size * in_bytes
                         + N * C * Ho * Wo * out_bytes
                         + (w9c.size + b1c.size) * 4)

    out = pl.pallas_call(
        _dwconv_s2_kernel,
        out_shape=jax.ShapeDtypeStruct((N, C, Ho, Wo), x_nchw.dtype),
        grid_spec=pltpu.PrefetchScalarGridSpec(
            num_scalar_prefetch=0,
            grid=(N, C // CT),
            in_specs=[xin_spec, xin_spec, smem_spec, smem_spec],
            out_specs=out_spec,
        ),
        compiler_params=pltpu.CompilerParams(
            dimension_semantics=("parallel", "parallel"),
            vmem_limit_bytes=48 * 1024 * 1024,
        ),
        cost_estimate=pl.CostEstimate(
            flops=18 * N * C * Ho * Wo,
            transcendentals=0,
            bytes_accessed=bytes_accessed,
        ),
    )(x_ef, x_of, w9c, b1c)

    return out                                     # already NCHW


# ----------------------------------------------------------------------------
# Reference (plain JAX) for correctness check.
# ----------------------------------------------------------------------------
def _reference(x_nchw, weight_sn, bias):
    C = x_nchw.shape[1]
    out = jax.lax.conv_general_dilated(
        x_nchw.astype(jnp.float32),
        weight_sn.astype(jnp.float32),
        window_strides=(2, 2),
        padding=((1, 1), (1, 1)),
        dimension_numbers=("NCHW", "OIHW", "NCHW"),
        feature_group_count=C,
        precision=jax.lax.Precision.HIGHEST,
    )
    return out + bias.reshape(1, C, 1, 1)


if __name__ == "__main__":
    key = jax.random.PRNGKey(0)
    k_x, k_w, k_b, k_u, k_x2 = jax.random.split(key, 5)

    N, C, H, W = 2, 4, 16, 16        # dim_in = 4
    x = jax.random.normal(k_x, (N, C, H, W), dtype=jnp.float32)

    # Deterministic synthetic parameters for Conv2d(dim_in, dim_in, 3, 3, groups=dim_in):
    # weight shape (C, 1, 3, 3), bias shape (C,).  (Kaiming-uniform-ish bounds.)
    fan_in = 1 * 3 * 3
    bound_w = (6.0 / fan_in) ** 0.5
    bound_b = 1.0 / (fan_in ** 0.5)
    weight = jax.random.uniform(k_w, (C, 1, 3, 3), jnp.float32, -bound_w, bound_w)
    bias = jax.random.uniform(k_b, (C,), jnp.float32, -bound_b, bound_b)

    # Spectral norm of the conv weight (converged power iteration).
    weight_sn = _spectral_normalize(weight, k_u)

    out = jax.block_until_ready(learned_downsample(x, weight_sn, bias))
    ref = _reference(x, weight_sn, bias)
    assert out.shape == (N, C, (H - 1) // 2 + 1, (W - 1) // 2 + 1)
    assert jnp.allclose(out, ref, rtol=1e-5, atol=1e-5), float(jnp.max(jnp.abs(out - ref)))

    # Odd spatial sizes exercise the padding / parity bookkeeping.
    x2 = jax.random.normal(k_x2, (N, C, 15, 13), dtype=jnp.float32)
    out2 = jax.block_until_ready(learned_downsample(x2, weight_sn, bias))
    ref2 = _reference(x2, weight_sn, bias)
    assert jnp.allclose(out2, ref2, rtol=1e-5, atol=1e-5), float(jnp.max(jnp.abs(out2 - ref2)))

    print("KERNEL_OK")
</pallas_src>

<mosaic_0001>
module attributes {stable_mosaic.version = 11 : i64} {
  func.func @_dwconv_s2_kernel(%arg0: i32, %arg1: i32, %arg2: memref<1x4x9x18xf32, #tpu.memory_space<vmem>>, %arg3: memref<1x4x9x18xf32, #tpu.memory_space<vmem>>, %arg4: memref<9x4xf32, #tpu.memory_space<smem>>, %arg5: memref<1x4xf32, #tpu.memory_space<smem>>, %arg6: memref<1x4x8x8xf32, #tpu.memory_space<vmem>>) attributes {dimension_semantics = [#tpu.dimension_semantics<parallel>, #tpu.dimension_semantics<parallel>], iteration_bounds = array<i64: 2, 1>, scalar_prefetch = 0 : i64, scratch_operands = 0 : i64, tpu.core_type = #tpu.core_type<tc>, window_params = [{transform_indices = @transform_0, window_bounds = array<i64: 1, 4, 9, 18>}, {transform_indices = @transform_1, window_bounds = array<i64: 1, 4, 9, 18>}, {transform_indices = @transform_2, window_bounds = array<i64: 9, 4>}, {transform_indices = @transform_3, window_bounds = array<i64: 1, 4>}, {transform_indices = @transform_4, window_bounds = array<i64: 1, 4, 8, 8>}]} {
    %c4_i32 = arith.constant 4 : i32
    %0 = arith.muli %arg1, %c4_i32 : i32
    %c0_i32 = arith.constant 0 : i32
    %1 = arith.addi %0, %c0_i32 : i32
    %c0 = arith.constant 0 : index
    %2 = arith.index_cast %1 : i32 to index
    %3 = memref.load %arg4[%c0, %2] : memref<9x4xf32, #tpu.memory_space<smem>>
    %c0_0 = arith.constant 0 : index
    %c0_1 = arith.constant 0 : index
    %c0_2 = arith.constant 0 : index
    %c0_3 = arith.constant 0 : index
    %4 = vector.load %arg2[%c0_0, %c0_1, %c0_2, %c0_3] : memref<1x4x9x18xf32, #tpu.memory_space<vmem>>, vector<1x1x8x8xf32>
    %5 = vector.shape_cast %4 : vector<1x1x8x8xf32> to vector<8x8xf32>
    %6 = vector.broadcast %3 : f32 to vector<8x8xf32>
    %7 = arith.mulf %6, %5 : vector<8x8xf32>
    %c1 = arith.constant 1 : index
    %8 = arith.index_cast %1 : i32 to index
    %9 = memref.load %arg4[%c1, %8] : memref<9x4xf32, #tpu.memory_space<smem>>
    %c0_4 = arith.constant 0 : index
    %c0_5 = arith.constant 0 : index
    %c0_6 = arith.constant 0 : index
    %c0_7 = arith.constant 0 : index
    %10 = vector.load %arg3[%c0_4, %c0_5, %c0_6, %c0_7] : memref<1x4x9x18xf32, #tpu.memory_space<vmem>>, vector<1x1x8x8xf32>
    %11 = vector.shape_cast %10 : vector<1x1x8x8xf32> to vector<8x8xf32>
    %12 = vector.broadcast %9 : f32 to vector<8x8xf32>
    %13 = arith.mulf %12, %11 : vector<8x8xf32>
    %14 = arith.addf %7, %13 : vector<8x8xf32>
    %c2 = arith.constant 2 : index
    %15 = arith.index_cast %1 : i32 to index
    %16 = memref.load %arg4[%c2, %15] : memref<9x4xf32, #tpu.memory_space<smem>>
    %c0_8 = arith.constant 0 : index
    %c0_9 = arith.constant 0 : index
    %c0_10 = arith.constant 0 : index
    %c1_11 = arith.constant 1 : index
    %17 = vector.load %arg2[%c0_8, %c0_9, %c0_10, %c1_11] : memref<1x4x9x18xf32, #tpu.memory_space<vmem>>, vector<1x1x8x8xf32>
    %18 = vector.shape_cast %17 : vector<1x1x8x8xf32> to vector<8x8xf32>
    %19 = vector.broadcast %16 : f32 to vector<8x8xf32>
    %20 = arith.mulf %19, %18 : vector<8x8xf32>
    %21 = arith.addf %14, %20 : vector<8x8xf32>
    %c3 = arith.constant 3 : index
    %22 = arith.index_cast %1 : i32 to index
    %23 = memref.load %arg4[%c3, %22] : memref<9x4xf32, #tpu.memory_space<smem>>
    %c0_12 = arith.constant 0 : index
    %c0_13 = arith.constant 0 : index
    %c0_14 = arith.constant 0 : index
    %c9 = arith.constant 9 : index
    %24 = vector.load %arg2[%c0_12, %c0_13, %c0_14, %c9] : memref<1x4x9x18xf32, #tpu.memory_space<vmem>>, vector<1x1x8x8xf32>
    %25 = vector.shape_cast %24 : vector<1x1x8x8xf32> to vector<8x8xf32>
    %26 = vector.broadcast %23 : f32 to vector<8x8xf32>
    %27 = arith.mulf %26, %25 : vector<8x8xf32>
    %28 = arith.addf %21, %27 : vector<8x8xf32>
    %c4 = arith.constant 4 : index
    %29 = arith.index_cast %1 : i32 to index
    %30 = memref.load %arg4[%c4, %29] : memref<9x4xf32, #tpu.memory_space<smem>>
    %c0_15 = arith.constant 0 : index
    %c0_16 = arith.constant 0 : index
    %c0_17 = arith.constant 0 : index
    %c9_18 = arith.constant 9 : index
    %31 = vector.load %arg3[%c0_15, %c0_16, %c0_17, %c9_18] : memref<1x4x9x18xf32, #tpu.memory_space<vmem>>, vector<1x1x8x8xf32>
    %32 = vector.shape_cast %31 : vector<1x1x8x8xf32> to vector<8x8xf32>
    %33 = vector.broadcast %30 : f32 to vector<8x8xf32>
    %34 = arith.mulf %33, %32 : vector<8x8xf32>
    %35 = arith.addf %28, %34 : vector<8x8xf32>
    %c5 = arith.constant 5 : index
    %36 = arith.index_cast %1 : i32 to index
    %37 = memref.load %arg4[%c5, %36] : memref<9x4xf32, #tpu.memory_space<smem>>
    %c0_19 = arith.constant 0 : index
    %c0_20 = arith.constant 0 : index
    %c0_21 = arith.constant 0 : index
    %c10 = arith.constant 10 : index
    %38 = vector.load %arg2[%c0_19, %c0_20, %c0_21, %c10] : memref<1x4x9x18xf32, #tpu.memory_space<vmem>>, vector<1x1x8x8xf32>
    %39 = vector.shape_cast %38 : vector<1x1x8x8xf32> to vector<8x8xf32>
    %40 = vector.broadcast %37 : f32 to vector<8x8xf32>
    %41 = arith.mulf %40, %39 : vector<8x8xf32>
    %42 = arith.addf %35, %41 : vector<8x8xf32>
    %c6 = arith.constant 6 : index
    %43 = arith.index_cast %1 : i32 to index
    %44 = memref.load %arg4[%c6, %43] : memref<9x4xf32, #tpu.memory_space<smem>>
    %c0_22 = arith.constant 0 : index
    %c0_23 = arith.constant 0 : index
    %c1_24 = arith.constant 1 : index
    %c0_25 = arith.constant 0 : index
    %45 = vector.load %arg2[%c0_22, %c0_23, %c1_24, %c0_25] : memref<1x4x9x18xf32, #tpu.memory_space<vmem>>, vector<1x1x8x8xf32>
    %46 = vector.shape_cast %45 : vector<1x1x8x8xf32> to vector<8x8xf32>
    %47 = vector.broadcast %44 : f32 to vector<8x8xf32>
    %48 = arith.mulf %47, %46 : vector<8x8xf32>
    %49 = arith.addf %42, %48 : vector<8x8xf32>
    %c7 = arith.constant 7 : index
    %50 = arith.index_cast %1 : i32 to index
    %51 = memref.load %arg4[%c7, %50] : memref<9x4xf32, #tpu.memory_space<smem>>
    %c0_26 = arith.constant 0 : index
    %c0_27 = arith.constant 0 : index
    %c1_28 = arith.constant 1 : index
    %c0_29 = arith.constant 0 : index
    %52 = vector.load %arg3[%c0_26, %c0_27, %c1_28, %c0_29] : memref<1x4x9x18xf32, #tpu.memory_space<vmem>>, vector<1x1x8x8xf32>
    %53 = vector.shape_cast %52 : vector<1x1x8x8xf32> to vector<8x8xf32>
    %54 = vector.broadcast %51 : f32 to vector<8x8xf32>
    %55 = arith.mulf %54, %53 : vector<8x8xf32>
    %56 = arith.addf %49, %55 : vector<8x8xf32>
    %c8 = arith.constant 8 : index
    %57 = arith.index_cast %1 : i32 to index
    %58 = memref.load %arg4[%c8, %57] : memref<9x4xf32, #tpu.memory_space<smem>>
    %c0_30 = arith.constant 0 : index
    %c0_31 = arith.constant 0 : index
    %c1_32 = arith.constant 1 : index
    %c1_33 = arith.constant 1 : index
    %59 = vector.load %arg2[%c0_30, %c0_31, %c1_32, %c1_33] : memref<1x4x9x18xf32, #tpu.memory_space<vmem>>, vector<1x1x8x8xf32>
    %60 = vector.shape_cast %59 : vector<1x1x8x8xf32> to vector<8x8xf32>
    %61 = vector.broadcast %58 : f32 to vector<8x8xf32>
    %62 = arith.mulf %61, %60 : vector<8x8xf32>
    %63 = arith.addf %56, %62 : vector<8x8xf32>
    %c0_34 = arith.constant 0 : index
    %64 = arith.index_cast %1 : i32 to index
    %65 = memref.load %arg5[%c0_34, %64] : memref<1x4xf32, #tpu.memory_space<smem>>
    %66 = vector.broadcast %65 : f32 to vector<8x8xf32>
    %67 = arith.addf %63, %66 : vector<8x8xf32>
    %c0_35 = arith.constant 0 : index
    %c0_36 = arith.constant 0 : index
    %c0_37 = arith.constant 0 : index
    %c0_38 = arith.constant 0 : index
    %68 = vector.load %arg6[%c0_35, %c0_36, %c0_37, %c0_38] : memref<1x4x8x8xf32, #tpu.memory_space<vmem>>, vector<1x1x8x8xf32>
    %69 = vector.shape_cast %68 : vector<1x1x8x8xf32> to vector<8x8xf32>
    %70 = vector.shape_cast %67 : vector<8x8xf32> to vector<1x1x8x8xf32>
    tpu.vector_store %arg6[%c0_35, %c0_36, %c0_37, %c0_38], %70 {strides = array<i32>} : memref<1x4x8x8xf32, #tpu.memory_space<vmem>>, vector<1x1x8x8xf32>,
    %c4_i32_39 = arith.constant 4 : i32
    %71 = arith.muli %arg1, %c4_i32_39 : i32
    %c1_i32 = arith.constant 1 : i32
    %72 = arith.addi %71, %c1_i32 : i32
    %c0_40 = arith.constant 0 : index
    %73 = arith.index_cast %72 : i32 to index
    %74 = memref.load %arg4[%c0_40, %73] : memref<9x4xf32, #tpu.memory_space<smem>>
    %c0_41 = arith.constant 0 : index
    %c1_42 = arith.constant 1 : index
    %c0_43 = arith.constant 0 : index
    %c0_44 = arith.constant 0 : index
    %75 = vector.load %arg2[%c0_41, %c1_42, %c0_43, %c0_44] : memref<1x4x9x18xf32, #tpu.memory_space<vmem>>, vector<1x1x8x8xf32>
    %76 = vector.shape_cast %75 : vector<1x1x8x8xf32> to vector<8x8xf32>
    %77 = vector.broadcast %74 : f32 to vector<8x8xf32>
    %78 = arith.mulf %77, %76 : vector<8x8xf32>
    %c1_45 = arith.constant 1 : index
    %79 = arith.index_cast %72 : i32 to index
    %80 = memref.load %arg4[%c1_45, %79] : memref<9x4xf32, #tpu.memory_space<smem>>
    %c0_46 = arith.constant 0 : index
    %c1_47 = arith.constant 1 : index
    %c0_48 = arith.constant 0 : index
    %c0_49 = arith.constant 0 : index
    %81 = vector.load %arg3[%c0_46, %c1_47, %c0_48, %c0_49] : memref<1x4x9x18xf32, #tpu.memory_space<vmem>>, vector<1x1x8x8xf32>
    %82 = vector.shape_cast %81 : vector<1x1x8x8xf32> to vector<8x8xf32>
    %83 = vector.broadcast %80 : f32 to vector<8x8xf32>
    %84 = arith.mulf %83, %82 : vector<8x8xf32>
    %85 = arith.addf %78, %84 : vector<8x8xf32>
    %c2_50 = arith.constant 2 : index
    %86 = arith.index_cast %72 : i32 to index
    %87 = memref.load %arg4[%c2_50, %86] : memref<9x4xf32, #tpu.memory_space<smem>>
    %c0_51 = arith.constant 0 : index
    %c1_52 = arith.constant 1 : index
    %c0_53 = arith.constant 0 : index
    %c1_54 = arith.constant 1 : index
    %88 = vector.load %arg2[%c0_51, %c1_52, %c0_53, %c1_54] : memref<1x4x9x18xf32, #tpu.memory_space<vmem>>, vector<1x1x8x8xf32>
    %89 = vector.shape_cast %88 : vector<1x1x8x8xf32> to vector<8x8xf32>
    %90 = vector.broadcast %87 : f32 to vector<8x8xf32>
    %91 = arith.mulf %90, %89 : vector<8x8xf32>
    %92 = arith.addf %85, %91 : vector<8x8xf32>
    %c3_55 = arith.constant 3 : index
    %93 = arith.index_cast %72 : i32 to index
    %94 = memref.load %arg4[%c3_55, %93] : memref<9x4xf32, #tpu.memory_space<smem>>
    %c0_56 = arith.constant 0 : index
    %c1_57 = arith.constant 1 : index
    %c0_58 = arith.constant 0 : index
    %c9_59 = arith.constant 9 : index
    %95 = vector.load %arg2[%c0_56, %c1_57, %c0_58, %c9_59] : memref<1x4x9x18xf32, #tpu.memory_space<vmem>>, vector<1x1x8x8xf32>
    %96 = vector.shape_cast %95 : vector<1x1x8x8xf32> to vector<8x8xf32>
    %97 = vector.broadcast %94 : f32 to vector<8x8xf32>
    %98 = arith.mulf %97, %96 : vector<8x8xf32>
    %99 = arith.addf %92, %98 : vector<8x8xf32>
    %c4_60 = arith.constant 4 : index
    %100 = arith.index_cast %72 : i32 to index
    %101 = memref.load %arg4[%c4_60, %100] : memref<9x4xf32, #tpu.memory_space<smem>>
    %c0_61 = arith.constant 0 : index
    %c1_62 = arith.constant 1 : index
    %c0_63 = arith.constant 0 : index
    %c9_64 = arith.constant 9 : index
    %102 = vector.load %arg3[%c0_61, %c1_62, %c0_63, %c9_64] : memref<1x4x9x18xf32, #tpu.memory_space<vmem>>, vector<1x1x8x8xf32>
    %103 = vector.shape_cast %102 : vector<1x1x8x8xf32> to vector<8x8xf32>
    %104 = vector.broadcast %101 : f32 to vector<8x8xf32>
    %105 = arith.mulf %104, %103 : vector<8x8xf32>
    %106 = arith.addf %99, %105 : vector<8x8xf32>
    %c5_65 = arith.constant 5 : index
    %107 = arith.index_cast %72 : i32 to index
    %108 = memref.load %arg4[%c5_65, %107] : memref<9x4xf32, #tpu.memory_space<smem>>
    %c0_66 = arith.constant 0 : index
    %c1_67 = arith.constant 1 : index
    %c0_68 = arith.constant 0 : index
    %c10_69 = arith.constant 10 : index
    %109 = vector.load %arg2[%c0_66, %c1_67, %c0_68, %c10_69] : memref<1x4x9x18xf32, #tpu.memory_space<vmem>>, vector<1x1x8x8xf32>
    %110 = vector.shape_cast %109 : vector<1x1x8x8xf32> to vector<8x8xf32>
    %111 = vector.broadcast %108 : f32 to vector<8x8xf32>
    %112 = arith.mulf %111, %110 : vector<8x8xf32>
    %113 = arith.addf %106, %112 : vector<8x8xf32>
    %c6_70 = arith.constant 6 : index
    %114 = arith.index_cast %72 : i32 to index
    %115 = memref.load %arg4[%c6_70, %114] : memref<9x4xf32, #tpu.memory_space<smem>>
    %c0_71 = arith.constant 0 : index
    %c1_72 = arith.constant 1 : index
    %c1_73 = arith.constant 1 : index
    %c0_74 = arith.constant 0 : index
    %116 = vector.load %arg2[%c0_71, %c1_72, %c1_73, %c0_74] : memref<1x4x9x18xf32, #tpu.memory_space<vmem>>, vector<1x1x8x8xf32>
    %117 = vector.shape_cast %116 : vector<1x1x8x8xf32> to vector<8x8xf32>
    %118 = vector.broadcast %115 : f32 to vector<8x8xf32>
    %119 = arith.mulf %118, %117 : vector<8x8xf32>
    %120 = arith.addf %113, %119 : vector<8x8xf32>
    %c7_75 = arith.constant 7 : index
    %121 = arith.index_cast %72 : i32 to index
    %122 = memref.load %arg4[%c7_75, %121] : memref<9x4xf32, #tpu.memory_space<smem>>
    %c0_76 = arith.constant 0 : index
    %c1_77 = arith.constant 1 : index
    %c1_78 = arith.constant 1 : index
    %c0_79 = arith.constant 0 : index
    %123 = vector.load %arg3[%c0_76, %c1_77, %c1_78, %c0_79] : memref<1x4x9x18xf32, #tpu.memory_space<vmem>>, vector<1x1x8x8xf32>
    %124 = vector.shape_cast %123 : vector<1x1x8x8xf32> to vector<8x8xf32>
    %125 = vector.broadcast %122 : f32 to vector<8x8xf32>
    %126 = arith.mulf %125, %124 : vector<8x8xf32>
    %127 = arith.addf %120, %126 : vector<8x8xf32>
    %c8_80 = arith.constant 8 : index
    %128 = arith.index_cast %72 : i32 to index
    %129 = memref.load %arg4[%c8_80, %128] : memref<9x4xf32, #tpu.memory_space<smem>>
    %c0_81 = arith.constant 0 : index
    %c1_82 = arith.constant 1 : index
    %c1_83 = arith.constant 1 : index
    %c1_84 = arith.constant 1 : index
    %130 = vector.load %arg2[%c0_81, %c1_82, %c1_83, %c1_84] : memref<1x4x9x18xf32, #tpu.memory_space<vmem>>, vector<1x1x8x8xf32>
    %131 = vector.shape_cast %130 : vector<1x1x8x8xf32> to vector<8x8xf32>
    %132 = vector.broadcast %129 : f32 to vector<8x8xf32>
    %133 = arith.mulf %132, %131 : vector<8x8xf32>
    %134 = arith.addf %127, %133 : vector<8x8xf32>
    %c0_85 = arith.constant 0 : index
    %135 = arith.index_cast %72 : i32 to index
    %136 = memref.load %arg5[%c0_85, %135] : memref<1x4xf32, #tpu.memory_space<smem>>
    %137 = vector.broadcast %136 : f32 to vector<8x8xf32>
    %138 = arith.addf %134, %137 : vector<8x8xf32>
    %c0_86 = arith.constant 0 : index
    %c1_87 = arith.constant 1 : index
    %c0_88 = arith.constant 0 : index
    %c0_89 = arith.constant 0 : index
    %139 = vector.load %arg6[%c0_86, %c1_87, %c0_88, %c0_89] : memref<1x4x8x8xf32, #tpu.memory_space<vmem>>, vector<1x1x8x8xf32>
    %140 = vector.shape_cast %139 : vector<1x1x8x8xf32> to vector<8x8xf32>
    %141 = vector.shape_cast %138 : vector<8x8xf32> to vector<1x1x8x8xf32>
    tpu.vector_store %arg6[%c0_86, %c1_87, %c0_88, %c0_89], %141 {strides = array<i32>} : memref<1x4x8x8xf32, #tpu.memory_space<vmem>>, vector<1x1x8x8xf32>,
    %c4_i32_90 = arith.constant 4 : i32
    %142 = arith.muli %arg1, %c4_i32_90 : i32
    %c2_i32 = arith.constant 2 : i32
    %143 = arith.addi %142, %c2_i32 : i32
    %c0_91 = arith.constant 0 : index
    %144 = arith.index_cast %143 : i32 to index
    %145 = memref.load %arg4[%c0_91, %144] : memref<9x4xf32, #tpu.memory_space<smem>>
    %c0_92 = arith.constant 0 : index
    %c2_93 = arith.constant 2 : index
    %c0_94 = arith.constant 0 : index
    %c0_95 = arith.constant 0 : index
    %146 = vector.load %arg2[%c0_92, %c2_93, %c0_94, %c0_95] : memref<1x4x9x18xf32, #tpu.memory_space<vmem>>, vector<1x1x8x8xf32>
    %147 = vector.shape_cast %146 : vector<1x1x8x8xf32> to vector<8x8xf32>
    %148 = vector.broadcast %145 : f32 to vector<8x8xf32>
    %149 = arith.mulf %148, %147 : vector<8x8xf32>
    %c1_96 = arith.constant 1 : index
    %150 = arith.index_cast %143 : i32 to index
    %151 = memref.load %arg4[%c1_96, %150] : memref<9x4xf32, #tpu.memory_space<smem>>
    %c0_97 = arith.constant 0 : index
    %c2_98 = arith.constant 2 : index
    %c0_99 = arith.constant 0 : index
    %c0_100 = arith.constant 0 : index
    %152 = vector.load %arg3[%c0_97, %c2_98, %c0_99, %c0_100] : memref<1x4x9x18xf32, #tpu.memory_space<vmem>>, vector<1x1x8x8xf32>
    %153 = vector.shape_cast %152 : vector<1x1x8x8xf32> to vector<8x8xf32>
    %154 = vector.broadcast %151 : f32 to vector<8x8xf32>
    %155 = arith.mulf %154, %153 : vector<8x8xf32>
    %156 = arith.addf %149, %155 : vector<8x8xf32>
    %c2_101 = arith.constant 2 : index
    %157 = arith.index_cast %143 : i32 to index
    %158 = memref.load %arg4[%c2_101, %157] : memref<9x4xf32, #tpu.memory_space<smem>>
    %c0_102 = arith.constant 0 : index
    %c2_103 = arith.constant 2 : index
    %c0_104 = arith.constant 0 : index
    %c1_105 = arith.constant 1 : index
    %159 = vector.load %arg2[%c0_102, %c2_103, %c0_104, %c1_105] : memref<1x4x9x18xf32, #tpu.memory_space<vmem>>, vector<1x1x8x8xf32>
    %160 = vector.shape_cast %159 : vector<1x1x8x8xf32> to vector<8x8xf32>
    %161 = vector.broadcast %158 : f32 to vector<8x8xf32>
    %162 = arith.mulf %161, %160 : vector<8x8xf32>
    %163 = arith.addf %156, %162 : vector<8x8xf32>
    %c3_106 = arith.constant 3 : index
    %164 = arith.index_cast %143 : i32 to index
    %165 = memref.load %arg4[%c3_106, %164] : memref<9x4xf32, #tpu.memory_space<smem>>
    %c0_107 = arith.constant 0 : index
    %c2_108 = arith.constant 2 : index
    %c0_109 = arith.constant 0 : index
    %c9_110 = arith.constant 9 : index
    %166 = vector.load %arg2[%c0_107, %c2_108, %c0_109, %c9_110] : memref<1x4x9x18xf32, #tpu.memory_space<vmem>>, vector<1x1x8x8xf32>
    %167 = vector.shape_cast %166 : vector<1x1x8x8xf32> to vector<8x8xf32>
    %168 = vector.broadcast %165 : f32 to vector<8x8xf32>
    %169 = arith.mulf %168, %167 : vector<8x8xf32>
    %170 = arith.addf %163, %169 : vector<8x8xf32>
    %c4_111 = arith.constant 4 : index
    %171 = arith.index_cast %143 : i32 to index
    %172 = memref.load %arg4[%c4_111, %171] : memref<9x4xf32, #tpu.memory_space<smem>>
    %c0_112 = arith.constant 0 : index
    %c2_113 = arith.constant 2 : index
    %c0_114 = arith.constant 0 : index
    %c9_115 = arith.constant 9 : index
    %173 = vector.load %arg3[%c0_112, %c2_113, %c0_114, %c9_115] : memref<1x4x9x18xf32, #tpu.memory_space<vmem>>, vector<1x1x8x8xf32>
    %174 = vector.shape_cast %173 : vector<1x1x8x8xf32> to vector<8x8xf32>
    %175 = vector.broadcast %172 : f32 to vector<8x8xf32>
    %176 = arith.mulf %175, %174 : vector<8x8xf32>
    %177 = arith.addf %170, %176 : vector<8x8xf32>
    %c5_116 = arith.constant 5 : index
    %178 = arith.index_cast %143 : i32 to index
    %179 = memref.load %arg4[%c5_116, %178] : memref<9x4xf32, #tpu.memory_space<smem>>
    %c0_117 = arith.constant 0 : index
    %c2_118 = arith.constant 2 : index
    %c0_119 = arith.constant 0 : index
    %c10_120 = arith.constant 10 : index
    %180 = vector.load %arg2[%c0_117, %c2_118, %c0_119, %c10_120] : memref<1x4x9x18xf32, #tpu.memory_space<vmem>>, vector<1x1x8x8xf32>
    %181 = vector.shape_cast %180 : vector<1x1x8x8xf32> to vector<8x8xf32>
    %182 = vector.broadcast %179 : f32 to vector<8x8xf32>
    %183 = arith.mulf %182, %181 : vector<8x8xf32>
    %184 = arith.addf %177, %183 : vector<8x8xf32>
    %c6_121 = arith.constant 6 : index
    %185 = arith.index_cast %143 : i32 to index
    %186 = memref.load %arg4[%c6_121, %185] : memref<9x4xf32, #tpu.memory_space<smem>>
    %c0_122 = arith.constant 0 : index
    %c2_123 = arith.constant 2 : index
    %c1_124 = arith.constant 1 : index
    %c0_125 = arith.constant 0 : index
    %187 = vector.load %arg2[%c0_122, %c2_123, %c1_124, %c0_125] : memref<1x4x9x18xf32, #tpu.memory_space<vmem>>, vector<1x1x8x8xf32>
    %188 = vector.shape_cast %187 : vector<1x1x8x8xf32> to vector<8x8xf32>
    %189 = vector.broadcast %186 : f32 to vector<8x8xf32>
    %190 = arith.mulf %189, %188 : vector<8x8xf32>
    %191 = arith.addf %184, %190 : vector<8x8xf32>
    %c7_126 = arith.constant 7 : index
    %192 = arith.index_cast %143 : i32 to index
    %193 = memref.load %arg4[%c7_126, %192] : memref<9x4xf32, #tpu.memory_space<smem>>
    %c0_127 = arith.constant 0 : index
    %c2_128 = arith.constant 2 : index
    %c1_129 = arith.constant 1 : index
    %c0_130 = arith.constant 0 : index
    %194 = vector.load %arg3[%c0_127, %c2_128, %c1_129, %c0_130] : memref<1x4x9x18xf32, #tpu.memory_space<vmem>>, vector<1x1x8x8xf32>
    %195 = vector.shape_cast %194 : vector<1x1x8x8xf32> to vector<8x8xf32>
    %196 = vector.broadcast %193 : f32 to vector<8x8xf32>
    %197 = arith.mulf %196, %195 : vector<8x8xf32>
    %198 = arith.addf %191, %197 : vector<8x8xf32>
    %c8_131 = arith.constant 8 : index
    %199 = arith.index_cast %143 : i32 to index
    %200 = memref.load %arg4[%c8_131, %199] : memref<9x4xf32, #tpu.memory_space<smem>>
    %c0_132 = arith.constant 0 : index
    %c2_133 = arith.constant 2 : index
    %c1_134 = arith.constant 1 : index
    %c1_135 = arith.constant 1 : index
    %201 = vector.load %arg2[%c0_132, %c2_133, %c1_134, %c1_135] : memref<1x4x9x18xf32, #tpu.memory_space<vmem>>, vector<1x1x8x8xf32>
    %202 = vector.shape_cast %201 : vector<1x1x8x8xf32> to vector<8x8xf32>
    %203 = vector.broadcast %200 : f32 to vector<8x8xf32>
    %204 = arith.mulf %203, %202 : vector<8x8xf32>
    %205 = arith.addf %198, %204 : vector<8x8xf32>
    %c0_136 = arith.constant 0 : index
    %206 = arith.index_cast %143 : i32 to index
    %207 = memref.load %arg5[%c0_136, %206] : memref<1x4xf32, #tpu.memory_space<smem>>
    %208 = vector.broadcast %207 : f32 to vector<8x8xf32>
    %209 = arith.addf %205, %208 : vector<8x8xf32>
    %c0_137 = arith.constant 0 : index
    %c2_138 = arith.constant 2 : index
    %c0_139 = arith.constant 0 : index
    %c0_140 = arith.constant 0 : index
    %210 = vector.load %arg6[%c0_137, %c2_138, %c0_139, %c0_140] : memref<1x4x8x8xf32, #tpu.memory_space<vmem>>, vector<1x1x8x8xf32>
    %211 = vector.shape_cast %210 : vector<1x1x8x8xf32> to vector<8x8xf32>
    %212 = vector.shape_cast %209 : vector<8x8xf32> to vector<1x1x8x8xf32>
    tpu.vector_store %arg6[%c0_137, %c2_138, %c0_139, %c0_140], %212 {strides = array<i32>} : memref<1x4x8x8xf32, #tpu.memory_space<vmem>>, vector<1x1x8x8xf32>,
    %c4_i32_141 = arith.constant 4 : i32
    %213 = arith.muli %arg1, %c4_i32_141 : i32
    %c3_i32 = arith.constant 3 : i32
    %214 = arith.addi %213, %c3_i32 : i32
    %c0_142 = arith.constant 0 : index
    %215 = arith.index_cast %214 : i32 to index
    %216 = memref.load %arg4[%c0_142, %215] : memref<9x4xf32, #tpu.memory_space<smem>>
    %c0_143 = arith.constant 0 : index
    %c3_144 = arith.constant 3 : index
    %c0_145 = arith.constant 0 : index
    %c0_146 = arith.constant 0 : index
    %217 = vector.load %arg2[%c0_143, %c3_144, %c0_145, %c0_146] : memref<1x4x9x18xf32, #tpu.memory_space<vmem>>, vector<1x1x8x8xf32>
    %218 = vector.shape_cast %217 : vector<1x1x8x8xf32> to vector<8x8xf32>
    %219 = vector.broadcast %216 : f32 to vector<8x8xf32>
    %220 = arith.mulf %219, %218 : vector<8x8xf32>
    %c1_147 = arith.constant 1 : index
    %221 = arith.index_cast %214 : i32 to index
    %222 = memref.load %arg4[%c1_147, %221] : memref<9x4xf32, #tpu.memory_space<smem>>
    %c0_148 = arith.constant 0 : index
    %c3_149 = arith.constant 3 : index
    %c0_150 = arith.constant 0 : index
    %c0_151 = arith.constant 0 : index
    %223 = vector.load %arg3[%c0_148, %c3_149, %c0_150, %c0_151] : memref<1x4x9x18xf32, #tpu.memory_space<vmem>>, vector<1x1x8x8xf32>
    %224 = vector.shape_cast %223 : vector<1x1x8x8xf32> to vector<8x8xf32>
    %225 = vector.broadcast %222 : f32 to vector<8x8xf32>
    %226 = arith.mulf %225, %224 : vector<8x8xf32>
    %227 = arith.addf %220, %226 : vector<8x8xf32>
    %c2_152 = arith.constant 2 : index
    %228 = arith.index_cast %214 : i32 to index
    %229 = memref.load %arg4[%c2_152, %228] : memref<9x4xf32, #tpu.memory_space<smem>>
    %c0_153 = arith.constant 0 : index
    %c3_154 = arith.constant 3 : index
    %c0_155 = arith.constant 0 : index
    %c1_156 = arith.constant 1 : index
    %230 = vector.load %arg2[%c0_153, %c3_154, %c0_155, %c1_156] : memref<1x4x9x18xf32, #tpu.memory_space<vmem>>, vector<1x1x8x8xf32>
    %231 = vector.shape_cast %230 : vector<1x1x8x8xf32> to vector<8x8xf32>
    %232 = vector.broadcast %229 : f32 to vector<8x8xf32>
    %233 = arith.mulf %232, %231 : vector<8x8xf32>
    %234 = arith.addf %227, %233 : vector<8x8xf32>
    %c3_157 = arith.constant 3 : index
    %235 = arith.index_cast %214 : i32 to index
    %236 = memref.load %arg4[%c3_157, %235] : memref<9x4xf32, #tpu.memory_space<smem>>
    %c0_158 = arith.constant 0 : index
    %c3_159 = arith.constant 3 : index
    %c0_160 = arith.constant 0 : index
    %c9_161 = arith.constant 9 : index
    %237 = vector.load %arg2[%c0_158, %c3_159, %c0_160, %c9_161] : memref<1x4x9x18xf32, #tpu.memory_space<vmem>>, vector<1x1x8x8xf32>
    %238 = vector.shape_cast %237 : vector<1x1x8x8xf32> to vector<8x8xf32>
    %239 = vector.broadcast %236 : f32 to vector<8x8xf32>
    %240 = arith.mulf %239, %238 : vector<8x8xf32>
    %241 = arith.addf %234, %240 : vector<8x8xf32>
    %c4_162 = arith.constant 4 : index
    %242 = arith.index_cast %214 : i32 to index
    %243 = memref.load %arg4[%c4_162, %242] : memref<9x4xf32, #tpu.memory_space<smem>>
    %c0_163 = arith.constant 0 : index
    %c3_164 = arith.constant 3 : index
    %c0_165 = arith.constant 0 : index
    %c9_166 = arith.constant 9 : index
    %244 = vector.load %arg3[%c0_163, %c3_164, %c0_165, %c9_166] : memref<1x4x9x18xf32, #tpu.memory_space<vmem>>, vector<1x1x8x8xf32>
    %245 = vector.shape_cast %244 : vector<1x1x8x8xf32> to vector<8x8xf32>
    %246 = vector.broadcast %243 : f32 to vector<8x8xf32>
    %247 = arith.mulf %246, %245 : vector<8x8xf32>
    %248 = arith.addf %241, %247 : vector<8x8xf32>
    %c5_167 = arith.constant 5 : index
    %249 = arith.index_cast %214 : i32 to index
    %250 = memref.load %arg4[%c5_167, %249] : memref<9x4xf32, #tpu.memory_space<smem>>
    %c0_168 = arith.constant 0 : index
    %c3_169 = arith.constant 3 : index
    %c0_170 = arith.constant 0 : index
    %c10_171 = arith.constant 10 : index
    %251 = vector.load %arg2[%c0_168, %c3_169, %c0_170, %c10_171] : memref<1x4x9x18xf32, #tpu.memory_space<vmem>>, vector<1x1x8x8xf32>
    %252 = vector.shape_cast %251 : vector<1x1x8x8xf32> to vector<8x8xf32>
    %253 = vector.broadcast %250 : f32 to vector<8x8xf32>
    %254 = arith.mulf %253, %252 : vector<8x8xf32>
    %255 = arith.addf %248, %254 : vector<8x8xf32>
    %c6_172 = arith.constant 6 : index
    %256 = arith.index_cast %214 : i32 to index
    %257 = memref.load %arg4[%c6_172, %256] : memref<9x4xf32, #tpu.memory_space<smem>>
    %c0_173 = arith.constant 0 : index
    %c3_174 = arith.constant 3 : index
    %c1_175 = arith.constant 1 : index
    %c0_176 = arith.constant 0 : index
    %258 = vector.load %arg2[%c0_173, %c3_174, %c1_175, %c0_176] : memref<1x4x9x18xf32, #tpu.memory_space<vmem>>, vector<1x1x8x8xf32>
    %259 = vector.shape_cast %258 : vector<1x1x8x8xf32> to vector<8x8xf32>
    %260 = vector.broadcast %257 : f32 to vector<8x8xf32>
    %261 = arith.mulf %260, %259 : vector<8x8xf32>
    %262 = arith.addf %255, %261 : vector<8x8xf32>
    %c7_177 = arith.constant 7 : index
    %263 = arith.index_cast %214 : i32 to index
    %264 = memref.load %arg4[%c7_177, %263] : memref<9x4xf32, #tpu.memory_space<smem>>
    %c0_178 = arith.constant 0 : index
    %c3_179 = arith.constant 3 : index
    %c1_180 = arith.constant 1 : index
    %c0_181 = arith.constant 0 : index
    %265 = vector.load %arg3[%c0_178, %c3_179, %c1_180, %c0_181] : memref<1x4x9x18xf32, #tpu.memory_space<vmem>>, vector<1x1x8x8xf32>
    %266 = vector.shape_cast %265 : vector<1x1x8x8xf32> to vector<8x8xf32>
    %267 = vector.broadcast %264 : f32 to vector<8x8xf32>
    %268 = arith.mulf %267, %266 : vector<8x8xf32>
    %269 = arith.addf %262, %268 : vector<8x8xf32>
    %c8_182 = arith.constant 8 : index
    %270 = arith.index_cast %214 : i32 to index
    %271 = memref.load %arg4[%c8_182, %270] : memref<9x4xf32, #tpu.memory_space<smem>>
    %c0_183 = arith.constant 0 : index
    %c3_184 = arith.constant 3 : index
    %c1_185 = arith.constant 1 : index
    %c1_186 = arith.constant 1 : index
    %272 = vector.load %arg2[%c0_183, %c3_184, %c1_185, %c1_186] : memref<1x4x9x18xf32, #tpu.memory_space<vmem>>, vector<1x1x8x8xf32>
    %273 = vector.shape_cast %272 : vector<1x1x8x8xf32> to vector<8x8xf32>
    %274 = vector.broadcast %271 : f32 to vector<8x8xf32>
    %275 = arith.mulf %274, %273 : vector<8x8xf32>
    %276 = arith.addf %269, %275 : vector<8x8xf32>
    %c0_187 = arith.constant 0 : index
    %277 = arith.index_cast %214 : i32 to index
    %278 = memref.load %arg5[%c0_187, %277] : memref<1x4xf32, #tpu.memory_space<smem>>
    %279 = vector.broadcast %278 : f32 to vector<8x8xf32>
    %280 = arith.addf %276, %279 : vector<8x8xf32>
    %c0_188 = arith.constant 0 : index
    %c3_189 = arith.constant 3 : index
    %c0_190 = arith.constant 0 : index
    %c0_191 = arith.constant 0 : index
    %281 = vector.load %arg6[%c0_188, %c3_189, %c0_190, %c0_191] : memref<1x4x8x8xf32, #tpu.memory_space<vmem>>, vector<1x1x8x8xf32>
    %282 = vector.shape_cast %281 : vector<1x1x8x8xf32> to vector<8x8xf32>
    %283 = vector.shape_cast %280 : vector<8x8xf32> to vector<1x1x8x8xf32>
    tpu.vector_store %arg6[%c0_188, %c3_189, %c0_190, %c0_191], %283 {strides = array<i32>} : memref<1x4x8x8xf32, #tpu.memory_space<vmem>>, vector<1x1x8x8xf32>,
    return
  }
  func.func @transform_0(%arg0: i32, %arg1: i32) -> (i32, i32, i32, i32) {
    %c0_i32 = arith.constant 0 : i32
    %c0_i32_0 = arith.constant 0 : i32
    %c0_i32_1 = arith.constant 0 : i32
    return %arg0, %arg1, %c0_i32, %c0_i32_0 : i32, i32, i32, i32
  }
  func.func @transform_1(%arg0: i32, %arg1: i32) -> (i32, i32, i32, i32) {
    %c0_i32 = arith.constant 0 : i32
    %c0_i32_0 = arith.constant 0 : i32
    %c0_i32_1 = arith.constant 0 : i32
    return %arg0, %arg1, %c0_i32, %c0_i32_0 : i32, i32, i32, i32
  }
  func.func @transform_2(%arg0: i32, %arg1: i32) -> (i32, i32) {
    %c0_i32 = arith.constant 0 : i32
    %c0_i32_0 = arith.constant 0 : i32
    %c0_i32_1 = arith.constant 0 : i32
    return %c0_i32, %c0_i32_0 : i32, i32
  }
  func.func @transform_3(%arg0: i32, %arg1: i32) -> (i32, i32) {
    %c0_i32 = arith.constant 0 : i32
    %c0_i32_0 = arith.constant 0 : i32
    %c0_i32_1 = arith.constant 0 : i32
    return %c0_i32, %c0_i32_0 : i32, i32
  }
  func.func @transform_4(%arg0: i32, %arg1: i32) -> (i32, i32, i32, i32) {
    %c0_i32 = arith.constant 0 : i32
    %c0_i32_0 = arith.constant 0 : i32
    %c0_i32_1 = arith.constant 0 : i32
    return %arg0, %arg1, %c0_i32, %c0_i32_0 : i32, i32, i32, i32
  }
}

</mosaic_0001>

<llo_original>
// kernel: learned_downsample.1
$region0: #{learned_downsample.1}
  #allocation0 [shape = 'u32[]', space=smem, size = 0x4, offset = 0x4, fixed_abs, tag = 'smem constant byte address 0x4 - core index']
  #allocation1 [shape = 'u32[144,128]{1,0:T(1,128)}', space=vmem, size = 0x12000, scoped, tag = 'internal scratch']
  %s0 = inlined_call_operand.vmem [shape: f32[2,4,9,18], index: 0, kind: input, shape index: {}]
  %s1 = inlined_call_operand.vmem [shape: f32[2,4,9,18], index: 1, kind: input, shape index: {}]
  %s2 = inlined_call_operand.vmem [shape: f32[9,4], index: 2, kind: input, shape index: {}]
  %s3 = inlined_call_operand.vmem [shape: f32[1,4], index: 3, kind: input, shape index: {}]
  %s4 = inlined_call_operand.hbm [shape: f32[2,4,8,8], index: 4, kind: output, shape index: {}]
  %s5 = sld [smem:[#allocation0]]
  $region57: #{learned_downsample.1} parent=0
    _
  %s7 = ssub.s32 1, %s5
  %s8 = scalar_select 0, %s7, %s5
  $region1: #{learned_downsample.1} parent=0
    #allocation2 [shape = 'u8[8192]{0}', space=smem, size = 0x2000, scoped, tag = 'input window, operand 2, single buffered']
    #allocation3 [shape = 's32[2]{0}', space=sflag, size = 0x8, scoped, tag = 'scoped memory for learned_downsample.1']
    #allocation4 [shape = 's32[2]{0}', space=sflag, size = 0x8, scoped, tag = 'scoped memory for learned_downsample.1']
    #allocation5 [shape = 'u8[512]{0}', space=smem, size = 0x200, scoped, tag = 'input window, operand 3, single buffered']
    #allocation6 [shape = 's32[1]{0}', space=sflag, size = 0x4, scoped, tag = 'scoped memory for learned_downsample.1']
    #allocation7 [shape = 'u8[32768]{0}', space=vmem, size = 0x8000, scoped, tag = 'output window, operand 0']
    %9 = vsyncpa [#allocation4], 0
    %10 = vsyncpa [#allocation6], 0
    %11 = vsyncpa [#allocation3], 0
    %s12 = scalar_lea.sflag [#allocation3], 1
    %13 = vsyncpa %s12, 0
    loop: start=0, step=1, limit=4
    $region2: #{learned_downsample.1} parent=1 // loop_pre_header
      _
    $region3: #{learned_downsample.1} parent=1 // loop_header
      %s15 = sphi 0, %s19
      %p16 = scmp.ge.s32.totalorder %s15, 4
      %s22 = sphi 0, %s34
      %s23 = sphi 0, %s30
      %s24 = sphi 0, %s22
      %s25 = sphi 0, %s23
      %s26 = sphi 0, %s24
      %s27 = sphi 0, %s25
      %s39 = sphi 0, %s41
      %s42 = sphi 0, %s39
      %s43 = sphi 0, %s42
      %s59 = sphi 0, %s43
      %s67 = sphi 0, %s69
      %s70 = sphi 0, %s67
      %s71 = sphi 0, %s70
      %s87 = sphi 0, %s71
      %s91 = sphi 0, %s91
      %s93 = sphi 0, %s91
      %s94 = sphi 0, %s93
      %s108 = sphi 0, %s94
      %s112 = sphi 0, %s112
      %s114 = sphi 0, %s112
      %s115 = sphi 0, %s114
      %s129 = sphi 0, %s115
      %s137 = sphi 0, %s139
      %s140 = sphi 0, %s137
      %s141 = sphi 0, %s140
      %s157 = sphi 0, %s141
    $region4: #{learned_downsample.1} parent=1 // loop_header_branch
      %18 = sbr.rel (%p16) target = $region8
    $region5: #{learned_downsample.1} parent=1 // loop_body
      %s20 = ssub.s32 %s15, 1
      %s21 = ssub.s32 %s15, 2
      %s28 = sadd.s32 1, %s23
      %p29 = scmp.ge.s32.totalorder %s28, 1
      %s30 = scalar_select %p29, 0, %s28
      %s31 = sadd.s32 1, %s22
      %s32 = scalar_select %p29, %s31, %s22
      %p33 = scmp.ge.s32.totalorder %s32, 2
      %s34 = scalar_select %p33, 0, %s32
      %s35 = ssub.s32 %s22, %s34
      %s36 = ssub.s32 %s23, %s30
      %s37 = sor.u32 %s35, %s36
      %p38 = scmp.eq.s32.totalorder %s37, 0
      %s40 = sadd.s32 %s39, 1
      %s41 = scalar_select %p38, %s39, %s40
      %p44 = pneg %p38
      %p45 = scmp.eq.s32.totalorder %s15, 1
      %p46 = por %p44, %p45
      %p47 = scmp.ne.s32.totalorder %s39, %s42
      %p48 = scmp.eq.s32.totalorder %s15, 0
      %p49 = por %p47, %p48
      %p50 = scmp.ne.s32.totalorder %s39, %s42
      %p51 = scmp.eq.s32.totalorder %s20, 1
      %p52 = por %p50, %p51
      %p53 = scmp.ne.s32.totalorder %s42, %s43
      %p54 = scmp.eq.s32.totalorder %s20, 0
      %p55 = por %p53, %p54
      %p56 = scmp.ne.s32.totalorder %s42, %s43
      %p57 = scmp.eq.s32.totalorder %s21, 1
      %p58 = por %p56, %p57
      %p60 = scmp.ne.s32.totalorder %s43, %s59
      %p61 = scmp.eq.s32.totalorder %s21, 0
      %p62 = por %p60, %p61
      %s63 = ssub.s32 %s22, %s34
      %s64 = ssub.s32 %s23, %s30
      %s65 = sor.u32 %s63, %s64
      %p66 = scmp.eq.s32.totalorder %s65, 0
      %s68 = sadd.s32 %s67, 1
      %s69 = scalar_select %p66, %s67, %s68
      %p72 = pneg %p66
      %p73 = scmp.eq.s32.totalorder %s15, 1
      %p74 = por %p72, %p73
      %p75 = scmp.ne.s32.totalorder %s67, %s70
      %p76 = scmp.eq.s32.totalorder %s15, 0
      %p77 = por %p75, %p76
      %p78 = scmp.ne.s32.totalorder %s67, %s70
      %p79 = scmp.eq.s32.totalorder %s20, 1
      %p80 = por %p78, %p79
      %p81 = scmp.ne.s32.totalorder %s70, %s71
      %p82 = scmp.eq.s32.totalorder %s20, 0
      %p83 = por %p81, %p82
      %p84 = scmp.ne.s32.totalorder %s70, %s71
      %p85 = scmp.eq.s32.totalorder %s21, 1
      %p86 = por %p84, %p85
      %p88 = scmp.ne.s32.totalorder %s71, %s87
      %p89 = scmp.eq.s32.totalorder %s21, 0
      %p90 = por %p88, %p89
      %s92 = sadd.s32 %s91, 1
      %p95 = scmp.eq.s32.totalorder %s15, 1
      %p96 = scmp.ne.s32.totalorder %s91, %s93
      %p97 = scmp.eq.s32.totalorder %s15, 0
      %p98 = por %p96, %p97
      %p99 = scmp.ne.s32.totalorder %s91, %s93
      %p100 = scmp.eq.s32.totalorder %s20, 1
      %p101 = por %p99, %p100
      %p102 = scmp.ne.s32.totalorder %s93, %s94
      %p103 = scmp.eq.s32.totalorder %s20, 0
      %p104 = por %p102, %p103
      %p105 = scmp.ne.s32.totalorder %s93, %s94
      %p106 = scmp.eq.s32.totalorder %s21, 1
      %p107 = por %p105, %p106
      %p109 = scmp.ne.s32.totalorder %s94, %s108
      %p110 = scmp.eq.s32.totalorder %s21, 0
      %p111 = por %p109, %p110
      %s113 = sadd.s32 %s112, 1
      %p116 = scmp.eq.s32.totalorder %s15, 1
      %p117 = scmp.ne.s32.totalorder %s112, %s114
      %p118 = scmp.eq.s32.totalorder %s15, 0
      %p119 = por %p117, %p118
      %p120 = scmp.ne.s32.totalorder %s112, %s114
      %p121 = scmp.eq.s32.totalorder %s20, 1
      %p122 = por %p120, %p121
      %p123 = scmp.ne.s32.totalorder %s114, %s115
      %p124 = scmp.eq.s32.totalorder %s20, 0
      %p125 = por %p123, %p124
      %p126 = scmp.ne.s32.totalorder %s114, %s115
      %p127 = scmp.eq.s32.totalorder %s21, 1
      %p128 = por %p126, %p127
      %p130 = scmp.ne.s32.totalorder %s115, %s129
      %p131 = scmp.eq.s32.totalorder %s21, 0
      %p132 = por %p130, %p131
      %s133 = ssub.s32 %s22, %s34
      %s134 = ssub.s32 %s23, %s30
      %s135 = sor.u32 %s133, %s134
      %p136 = scmp.eq.s32.totalorder %s135, 0
      %s138 = sadd.s32 %s137, 1
      %s139 = scalar_select %p136, %s137, %s138
      %p142 = pneg %p136
      %p143 = scmp.eq.s32.totalorder %s15, 1
      %p144 = por %p142, %p143
      %p145 = scmp.ne.s32.totalorder %s137, %s140
      %p146 = scmp.eq.s32.totalorder %s15, 0
      %p147 = por %p145, %p146
      %p148 = scmp.ne.s32.totalorder %s137, %s140
      %p149 = scmp.eq.s32.totalorder %s20, 1
      %p150 = por %p148, %p149
      %p151 = scmp.ne.s32.totalorder %s140, %s141
      %p152 = scmp.eq.s32.totalorder %s20, 0
      %p153 = por %p151, %p152
      %p154 = scmp.ne.s32.totalorder %s140, %s141
      %p155 = scmp.eq.s32.totalorder %s21, 1
      %p156 = por %p154, %p155
      %p158 = scmp.ne.s32.totalorder %s141, %s157
      %p159 = scmp.eq.s32.totalorder %s21, 0
      %p160 = por %p158, %p159
      %p161 = scmp.le.s32.totalorder 1, %s15
      %p162 = scmp.lt.s32.totalorder %s15, 3
      %p163 = pnand %p161, %p162
      %p164 = pneg %p163
      // Predicated region
      $region9: #{learned_downsample.1} parent=5 // pred_check
        _
      $region10: #{learned_downsample.1} parent=5 // pred_check_branch
        %166 = sbr.rel (%p163) target = $region12
      $region11: #{learned_downsample.1} parent=5 // pred_region
        %s167 = ssub.s32 %s15, 1
        // Predicated region
        $region13: #{learned_downsample.1} parent=11 // pred_check
          %p168 = pneg %p104
        $region14: #{learned_downsample.1} parent=11 // pred_check_branch
          %170 = sbr.rel (%p168) target = $region16
        $region15: #{learned_downsample.1} parent=11 // pred_region
          %s172 = ssub.s32 256, 256
          %173 = vsyncadd [#allocation4], %s172
          %s174 = sshll.u32 %s2, 4
          %s175 = int_to_ptr.vmem [resolvable:$true] %s174
          %180 = dma.vmem_to_smem %s175, 256, [#allocation2], [#allocation4], 128, 128, 8
        $region16: #{learned_downsample.1} parent=11 // pred_fallthru
          _
        // Predicated region
        $region17: #{learned_downsample.1} parent=11 // pred_check
          %p181 = pneg %p125
        $region18: #{learned_downsample.1} parent=11 // pred_check_branch
          %183 = sbr.rel (%p181) target = $region20
        $region19: #{learned_downsample.1} parent=11 // pred_region
          %s185 = ssub.s32 16, 16
          %186 = vsyncadd [#allocation6], %s185
          %s188 = sshll.u32 %s3, 4
          %s189 = int_to_ptr.vmem [resolvable:$true] %s188
          %191 = dma.vmem_to_smem %s189, 16, [#allocation5], [#allocation6]
        $region20: #{learned_downsample.1} parent=11 // pred_fallthru
          _
      $region12: #{learned_downsample.1} parent=5 // pred_fallthru
        _
      %p192 = scmp.lt.s32.totalorder %s15, 2
      // Predicated region
      $region21: #{learned_downsample.1} parent=5 // pred_check
        %p193 = pneg %p192
      $region22: #{learned_downsample.1} parent=5 // pred_check_branch
        %195 = sbr.rel (%p193) target = $region24
      $region23: #{learned_downsample.1} parent=5 // pred_region
        // Predicated region
        $region25: #{learned_downsample.1} parent=23 // pred_check
          %p196 = pneg %p49
        $region26: #{learned_downsample.1} parent=23 // pred_check_branch
          %198 = sbr.rel (%p196) target = $region28
        $region27: #{learned_downsample.1} parent=23 // pred_region
          %s199 = smul.u32 4, %s23
          %p200 = scmp.lt.s32.totalorder %s22, 1
          %s201 = scalar_select %p200, %s22, 1
          %p202 = scmp.lt.s32.totalorder %s199, 3
          %s203 = scalar_select %p202, %s199, 3
          %s204 = smul.addr %s203, 2
          %s205 = smul.addr %s201, 8
          %s206 = sadd.s32 %s204, %s205
          %s207 = smul.addr %s206, 8
          %s208 = scalar_lea.vmem %s0, %s207
          %s209 = smul.u32 4, %s23
        $region28: #{learned_downsample.1} parent=23 // pred_fallthru
          _
        // Predicated region
        $region29: #{learned_downsample.1} parent=23 // pred_check
          %p210 = pneg %p77
        $region30: #{learned_downsample.1} parent=23 // pred_check_branch
          %212 = sbr.rel (%p210) target = $region32
        $region31: #{learned_downsample.1} parent=23 // pred_region
          %s213 = smul.u32 4, %s23
          %p214 = scmp.lt.s32.totalorder %s22, 1
          %s215 = scalar_select %p214, %s22, 1
          %p216 = scmp.lt.s32.totalorder %s213, 3
          %s217 = scalar_select %p216, %s213, 3
          %s218 = smul.addr %s217, 2
          %s219 = smul.addr %s215, 8
          %s220 = sadd.s32 %s218, %s219
          %s221 = smul.addr %s220, 8
          %s222 = scalar_lea.vmem %s1, %s221
          %s223 = smul.u32 4, %s23
        $region32: #{learned_downsample.1} parent=23 // pred_fallthru
          _
      $region24: #{learned_downsample.1} parent=5 // pred_fallthru
        _
      %p224 = scmp.le.s32.totalorder 1, %s15
      %p225 = scmp.lt.s32.totalorder %s15, 3
      %p226 = pnand %p224, %p225
      %p227 = pneg %p226
      // Predicated region
      $region33: #{learned_downsample.1} parent=5 // pred_check
        _
      $region34: #{learned_downsample.1} parent=5 // pred_check_branch
        %229 = sbr.rel (%p226) target = $region36
      $region35: #{learned_downsample.1} parent=5 // pred_region
        %s230 = ssub.s32 %s15, 1
        // Predicated region
        $region37: #{learned_downsample.1} parent=35 // pred_check
          %p231 = pneg %p104
        $region38: #{learned_downsample.1} parent=35 // pred_check_branch
          %233 = sbr.rel (%p231) target = $region40
        $region39: #{learned_downsample.1} parent=35 // pred_region
          %234 = dma.done [#allocation4], 256
        $region40: #{learned_downsample.1} parent=35 // pred_fallthru
          _
        // Predicated region
        $region41: #{learned_downsample.1} parent=35 // pred_check
          %p235 = pneg %p125
        $region42: #{learned_downsample.1} parent=35 // pred_check_branch
          %237 = sbr.rel (%p235) target = $region44
        $region43: #{learned_downsample.1} parent=35 // pred_region
          %238 = dma.done [#allocation6], 16
        $region44: #{learned_downsample.1} parent=35 // pred_fallthru
          _
        %239 = sfence
        %s240 = smul.u32 4, %s25
        %p241 = scmp.lt.s32.totalorder %s24, 1
        %s242 = scalar_select %p241, %s24, 1
        %p243 = scmp.lt.s32.totalorder %s240, 3
        %s244 = scalar_select %p243, %s240, 3
        %s245 = smul.addr %s244, 2
        %s246 = smul.addr %s242, 8
        %s247 = sadd.s32 %s245, %s246
        %s248 = smul.addr %s247, 8
        %s249 = scalar_lea.vmem %s0, %s248
        %p250 = pneg %p55
        %p251 = pneg %p52
        %s252 = smul.u32 4, %s25
        %p253 = scmp.lt.s32.totalorder %s24, 1
        %s254 = scalar_select %p253, %s24, 1
        %p255 = scmp.lt.s32.totalorder %s252, 3
        %s256 = scalar_select %p255, %s252, 3
        %s257 = smul.addr %s256, 2
        %s258 = smul.addr %s254, 8
        %s259 = sadd.s32 %s257, %s258
        %s260 = smul.addr %s259, 8
        %s261 = scalar_lea.vmem %s1, %s260
        %p262 = pneg %p83
        %p263 = pneg %p80
        %p264 = pneg %p104
        %p265 = pneg %p101
        %p266 = pneg %p125
        %p267 = pneg %p122
        %p268 = pneg %p153
        %p269 = pneg %p150
        %s270 = sand.u32 %s140, 1
        %s271 = scalar_lea.sflag [#allocation3], %s270
        %s272 = sand.u32 %s140, 1
        %s273 = smul.addr %s272, 32
        %s274 = scalar_lea.vmem [#allocation7], %s273
        %s275 = smul.u32 4, %s25
        %p276 = scmp.lt.s32.totalorder %s24, 1
        %s277 = scalar_select %p276, %s24, 1
        %p278 = scmp.lt.s32.totalorder %s275, 3
        %s279 = scalar_select %p278, %s275, 3
        %s280 = smul.addr %s279, 2
        %s281 = smul.addr %s277, 8
        %s282 = sadd.s32 %s280, %s281
        %s283 = smul.addr %s282, 8
        %s284 = scalar_lea.vmem %s0, %s283
        %s285 = smul.u32 4, %s25
        %s286 = smul.u32 4, %s25
        %p287 = scmp.lt.s32.totalorder %s24, 1
        %s288 = scalar_select %p287, %s24, 1
        %p289 = scmp.lt.s32.totalorder %s286, 3
        %s290 = scalar_select %p289, %s286, 3
        %s291 = smul.addr %s290, 2
        %s292 = smul.addr %s288, 8
        %s293 = sadd.s32 %s291, %s292
        %s294 = smul.addr %s293, 8
        %s295 = scalar_lea.vmem %s1, %s294
        %s296 = smul.u32 4, %s25
        %s297 = smul.u32 4, %s25
        %s298 = smul.u32 %s25, 4
        %s299 = sld [smem:[#allocation2 + %s298]]
        %v300 = vld [vmem:[%s284] sm:$0xff]
        %v301 = vstv %s299
        %v302 = vmul.f32 %v301, %v300
        %s303 = sshra.s32 %s298, 7
        %s304 = sand.u32 %s298, 127
        %s305 = sadd.s32 %s303, 1
        %s306 = smul.u32 %s305, 128
        %s307 = sshra.s32 %s298, 7
        %s308 = sand.u32 %s298, 127
        %s309 = sadd.s32 %s306, %s308
        %s310 = sld [smem:[#allocation2 + %s309]]
        %v311 = vld [vmem:[%s295] sm:$0xff]
        %v312 = vstv %s310
        %v313 = vmul.f32 %v312, %v311
        %v314 = vadd.f32 %v302, %v313
        %s315 = sadd.s32 %s303, 2
        %s316 = smul.u32 %s315, 128
        %s317 = sadd.s32 %s316, %s308
        %s318 = sld [smem:[#allocation2 + %s317]]
        %v319 = vstv %s318
        %v320 = vmul.f32 %v319, %v300
        %322 = vrot.lane.b32.xlu0 %v320, 127
        %v323 = vpop.permute.xlu0 %322
        %v325 = vadd.f32 %v314, %v323
        %s326 = sadd.s32 %s303, 3
        %s327 = smul.u32 %s326, 128
        %s328 = sadd.s32 %s327, %s308
        %s329 = sld [smem:[#allocation2 + %s328]]
        %v330 = vstv %s329
        %v331 = vmul.f32 %v330, %v300
        %333 = vrot.lane.b32.xlu0 %v331, 119
        %v334 = vpop.permute.xlu0 %333
        %v336 = vadd.f32 %v325, %v334
        %s337 = sadd.s32 %s303, 4
        %s338 = smul.u32 %s337, 128
        %s339 = sadd.s32 %s338, %s308
        %s340 = sld [smem:[#allocation2 + %s339]]
        %v341 = vstv %s340
        %v342 = vmul.f32 %v341, %v311
        %344 = vrot.lane.b32.xlu0 %v342, 119
        %v345 = vpop.permute.xlu0 %344
        %v347 = vadd.f32 %v336, %v345
        %s348 = sadd.s32 %s303, 5
        %s349 = smul.u32 %s348, 128
        %s350 = sadd.s32 %s349, %s308
        %s351 = sld [smem:[#allocation2 + %s350]]
        %v352 = vstv %s351
        %v353 = vmul.f32 %v352, %v300
        %355 = vrot.lane.b32.xlu0 %v353, 118
        %v356 = vpop.permute.xlu0 %355
        %v358 = vadd.f32 %v347, %v356
        %s359 = sadd.s32 %s303, 6
        %s360 = smul.u32 %s359, 128
        %s361 = sadd.s32 %s360, %s308
        %s362 = sld [smem:[#allocation2 + %s361]]
        %v363 = vld [vmem:[%s284 + $0x1] sm:$0xff]
        %v364 = vstv %s362
        %v365 = vmul.f32 %v364, %v363
        %v366 = vadd.f32 %v358, %v365
        %s367 = sadd.s32 %s303, 7
        %s368 = smul.u32 %s367, 128
        %s369 = sadd.s32 %s368, %s308
        %s370 = sld [smem:[#allocation2 + %s369]]
        %v371 = vld [vmem:[%s295 + $0x1] sm:$0xff]
        %v372 = vstv %s370
        %v373 = vmul.f32 %v372, %v371
        %v374 = vadd.f32 %v366, %v373
        %s375 = sadd.s32 %s303, 8
        %s376 = smul.u32 %s375, 128
        %s377 = sadd.s32 %s376, %s308
        %s378 = sld [smem:[#allocation2 + %s377]]
        %v379 = vstv %s378
        %v380 = vmul.f32 %v379, %v363
        %382 = vrot.lane.b32.xlu0 %v380, 127
        %v383 = vpop.permute.xlu0 %382
        %v385 = vadd.f32 %v374, %v383
        %s386 = sld [smem:[#allocation5 + %s298]]
        %v387 = vstv %s386
        %v388 = vadd.f32 %v385, %v387
        %vm389 = vcmask 64512
        %390 = vst.msk [vmem:[%s274] sm:$0xff] %vm389, %v388
        %s391 = sadd.s32 %s298, 1
        %s392 = sld [smem:[#allocation2 + %s391]]
        %s393 = scalar_lea.vmem %s284, 16
        %v394 = vld [vmem:[%s393] sm:$0xff]
        %v395 = vstv %s392
        %v396 = vmul.f32 %v395, %v394
        %s397 = sshra.s32 %s391, 7
        %s398 = sand.u32 %s391, 127
        %s399 = sadd.s32 %s397, 1
        %s400 = smul.u32 %s399, 128
        %s401 = sshra.s32 %s391, 7
        %s402 = sand.u32 %s391, 127
        %s403 = sadd.s32 %s400, %s402
        %s404 = sld [smem:[#allocation2 + %s403]]
        %s405 = scalar_lea.vmem %s295, 16
        %v406 = vld [vmem:[%s405] sm:$0xff]
        %v407 = vstv %s404
        %v408 = vmul.f32 %v407, %v406
        %v409 = vadd.f32 %v396, %v408
        %s410 = sadd.s32 %s397, 2
        %s411 = smul.u32 %s410, 128
        %s412 = sadd.s32 %s411, %s402
        %s413 = sld [smem:[#allocation2 + %s412]]
        %v414 = vstv %s413
        %v415 = vmul.f32 %v414, %v394
        %417 = vrot.lane.b32.xlu0 %v415, 127
        %v418 = vpop.permute.xlu0 %417
        %v420 = vadd.f32 %v409, %v418
        %s421 = sadd.s32 %s397, 3
        %s422 = smul.u32 %s421, 128
        %s423 = sadd.s32 %s422, %s402
        %s424 = sld [smem:[#allocation2 + %s423]]
        %v425 = vstv %s424
        %v426 = vmul.f32 %v425, %v394
        %428 = vrot.lane.b32.xlu0 %v426, 119
        %v429 = vpop.permute.xlu0 %428
        %v431 = vadd.f32 %v420, %v429
        %s432 = sadd.s32 %s397, 4
        %s433 = smul.u32 %s432, 128
        %s434 = sadd.s32 %s433, %s402
        %s435 = sld [smem:[#allocation2 + %s434]]
        %v436 = vstv %s435
        %v437 = vmul.f32 %v436, %v406
        %439 = vrot.lane.b32.xlu0 %v437, 119
        %v440 = vpop.permute.xlu0 %439
        %v442 = vadd.f32 %v431, %v440
        %s443 = sadd.s32 %s397, 5
        %s444 = smul.u32 %s443, 128
        %s445 = sadd.s32 %s444, %s402
        %s446 = sld [smem:[#allocation2 + %s445]]
        %v447 = vstv %s446
        %v448 = vmul.f32 %v447, %v394
        %450 = vrot.lane.b32.xlu0 %v448, 118
        %v451 = vpop.permute.xlu0 %450
        %v453 = vadd.f32 %v442, %v451
        %s454 = sadd.s32 %s397, 6
        %s455 = smul.u32 %s454, 128
        %s456 = sadd.s32 %s455, %s402
        %s457 = sld [smem:[#allocation2 + %s456]]
        %v458 = vld [vmem:[%s393 + $0x1] sm:$0xff]
        %v459 = vstv %s457
        %v460 = vmul.f32 %v459, %v458
        %v461 = vadd.f32 %v453, %v460
        %s462 = sadd.s32 %s397, 7
        %s463 = smul.u32 %s462, 128
        %s464 = sadd.s32 %s463, %s402
        %s465 = sld [smem:[#allocation2 + %s464]]
        %v466 = vld [vmem:[%s405 + $0x1] sm:$0xff]
        %v467 = vstv %s465
        %v468 = vmul.f32 %v467, %v466
        %v469 = vadd.f32 %v461, %v468
        %s470 = sadd.s32 %s397, 8
        %s471 = smul.u32 %s470, 128
        %s472 = sadd.s32 %s471, %s402
        %s473 = sld [smem:[#allocation2 + %s472]]
        %v474 = vstv %s473
        %v475 = vmul.f32 %v474, %v458
        %477 = vrot.lane.b32.xlu0 %v475, 127
        %v478 = vpop.permute.xlu0 %477
        %v480 = vadd.f32 %v469, %v478
        %s481 = sld [smem:[#allocation5 + %s391]]
        %v482 = vstv %s481
        %v483 = vadd.f32 %v480, %v482
        %s484 = scalar_lea.vmem %s274, 8 [#allocation7]
        %485 = vst.msk [vmem:[%s484] sm:$0xff] %vm389, %v483
        %s486 = sadd.s32 %s298, 2
        %s487 = sld [smem:[#allocation2 + %s486]]
        %s488 = scalar_lea.vmem %s284, 32
        %v489 = vld [vmem:[%s488] sm:$0xff]
        %v490 = vstv %s487
        %v491 = vmul.f32 %v490, %v489
        %s492 = sshra.s32 %s486, 7
        %s493 = sand.u32 %s486, 127
        %s494 = sadd.s32 %s492, 1
        %s495 = smul.u32 %s494, 128
        %s496 = sshra.s32 %s486, 7
        %s497 = sand.u32 %s486, 127
        %s498 = sadd.s32 %s495, %s497
        %s499 = sld [smem:[#allocation2 + %s498]]
        %s500 = scalar_lea.vmem %s295, 32
        %v501 = vld [vmem:[%s500] sm:$0xff]
        %v502 = vstv %s499
        %v503 = vmul.f32 %v502, %v501
        %v504 = vadd.f32 %v491, %v503
        %s505 = sadd.s32 %s492, 2
        %s506 = smul.u32 %s505, 128
        %s507 = sadd.s32 %s506, %s497
        %s508 = sld [smem:[#allocation2 + %s507]]
        %v509 = vstv %s508
        %v510 = vmul.f32 %v509, %v489
        %512 = vrot.lane.b32.xlu0 %v510, 127
        %v513 = vpop.permute.xlu0 %512
        %v515 = vadd.f32 %v504, %v513
        %s516 = sadd.s32 %s492, 3
        %s517 = smul.u32 %s516, 128
        %s518 = sadd.s32 %s517, %s497
        %s519 = sld [smem:[#allocation2 + %s518]]
        %v520 = vstv %s519
        %v521 = vmul.f32 %v520, %v489
        %523 = vrot.lane.b32.xlu0 %v521, 119
        %v524 = vpop.permute.xlu0 %523
        %v526 = vadd.f32 %v515, %v524
        %s527 = sadd.s32 %s492, 4
        %s528 = smul.u32 %s527, 128
        %s529 = sadd.s32 %s528, %s497
        %s530 = sld [smem:[#allocation2 + %s529]]
        %v531 = vstv %s530
        %v532 = vmul.f32 %v531, %v501
        %534 = vrot.lane.b32.xlu0 %v532, 119
        %v535 = vpop.permute.xlu0 %534
        %v537 = vadd.f32 %v526, %v535
        %s538 = sadd.s32 %s492, 5
        %s539 = smul.u32 %s538, 128
        %s540 = sadd.s32 %s539, %s497
        %s541 = sld [smem:[#allocation2 + %s540]]
        %v542 = vstv %s541
        %v543 = vmul.f32 %v542, %v489
        %545 = vrot.lane.b32.xlu0 %v543, 118
        %v546 = vpop.permute.xlu0 %545
        %v548 = vadd.f32 %v537, %v546
        %s549 = sadd.s32 %s492, 6
        %s550 = smul.u32 %s549, 128
        %s551 = sadd.s32 %s550, %s497
        %s552 = sld [smem:[#allocation2 + %s551]]
        %v553 = vld [vmem:[%s488 + $0x1] sm:$0xff]
        %v554 = vstv %s552
        %v555 = vmul.f32 %v554, %v553
        %v556 = vadd.f32 %v548, %v555
        %s557 = sadd.s32 %s492, 7
        %s558 = smul.u32 %s557, 128
        %s559 = sadd.s32 %s558, %s497
        %s560 = sld [smem:[#allocation2 + %s559]]
        %v561 = vld [vmem:[%s500 + $0x1] sm:$0xff]
        %v562 = vstv %s560
        %v563 = vmul.f32 %v562, %v561
        %v564 = vadd.f32 %v556, %v563
        %s565 = sadd.s32 %s492, 8
        %s566 = smul.u32 %s565, 128
        %s567 = sadd.s32 %s566, %s497
        %s568 = sld [smem:[#allocation2 + %s567]]
        %v569 = vstv %s568
        %v570 = vmul.f32 %v569, %v553
        %572 = vrot.lane.b32.xlu0 %v570, 127
        %v573 = vpop.permute.xlu0 %572
        %v575 = vadd.f32 %v564, %v573
        %s576 = sld [smem:[#allocation5 + %s486]]
        %v577 = vstv %s576
        %v578 = vadd.f32 %v575, %v577
        %s579 = scalar_lea.vmem %s274, 16 [#allocation7]
        %580 = vst.msk [vmem:[%s579] sm:$0xff] %vm389, %v578
        %s581 = sadd.s32 %s298, 3
        %s582 = sld [smem:[#allocation2 + %s581]]
        %s583 = scalar_lea.vmem %s284, 48
        %v584 = vld [vmem:[%s583] sm:$0xff]
        %v585 = vstv %s582
        %v586 = vmul.f32 %v585, %v584
        %s587 = sshra.s32 %s581, 7
        %s588 = sand.u32 %s581, 127
        %s589 = sadd.s32 %s587, 1
        %s590 = smul.u32 %s589, 128
        %s591 = sshra.s32 %s581, 7
        %s592 = sand.u32 %s581, 127
        %s593 = sadd.s32 %s590, %s592
        %s594 = sld [smem:[#allocation2 + %s593]]
        %s595 = scalar_lea.vmem %s295, 48
        %v596 = vld [vmem:[%s595] sm:$0xff]
        %v597 = vstv %s594
        %v598 = vmul.f32 %v597, %v596
        %v599 = vadd.f32 %v586, %v598
        %s600 = sadd.s32 %s587, 2
        %s601 = smul.u32 %s600, 128
        %s602 = sadd.s32 %s601, %s592
        %s603 = sld [smem:[#allocation2 + %s602]]
        %v604 = vstv %s603
        %v605 = vmul.f32 %v604, %v584
        %607 = vrot.lane.b32.xlu0 %v605, 127
        %v608 = vpop.permute.xlu0 %607
        %v610 = vadd.f32 %v599, %v608
        %s611 = sadd.s32 %s587, 3
        %s612 = smul.u32 %s611, 128
        %s613 = sadd.s32 %s612, %s592
        %s614 = sld [smem:[#allocation2 + %s613]]
        %v615 = vstv %s614
        %v616 = vmul.f32 %v615, %v584
        %618 = vrot.lane.b32.xlu0 %v616, 119
        %v619 = vpop.permute.xlu0 %618
        %v621 = vadd.f32 %v610, %v619
        %s622 = sadd.s32 %s587, 4
        %s623 = smul.u32 %s622, 128
        %s624 = sadd.s32 %s623, %s592
        %s625 = sld [smem:[#allocation2 + %s624]]
        %v626 = vstv %s625
        %v627 = vmul.f32 %v626, %v596
        %629 = vrot.lane.b32.xlu0 %v627, 119
        %v630 = vpop.permute.xlu0 %629
        %v632 = vadd.f32 %v621, %v630
        %s633 = sadd.s32 %s587, 5
        %s634 = smul.u32 %s633, 128
        %s635 = sadd.s32 %s634, %s592
        %s636 = sld [smem:[#allocation2 + %s635]]
        %v637 = vstv %s636
        %v638 = vmul.f32 %v637, %v584
        %640 = vrot.lane.b32.xlu0 %v638, 118
        %v641 = vpop.permute.xlu0 %640
        %v643 = vadd.f32 %v632, %v641
        %s644 = sadd.s32 %s587, 6
        %s645 = smul.u32 %s644, 128
        %s646 = sadd.s32 %s645, %s592
        %s647 = sld [smem:[#allocation2 + %s646]]
        %v648 = vld [vmem:[%s583 + $0x1] sm:$0xff]
        %v649 = vstv %s647
        %v650 = vmul.f32 %v649, %v648
        %v651 = vadd.f32 %v643, %v650
        %s652 = sadd.s32 %s587, 7
        %s653 = smul.u32 %s652, 128
        %s654 = sadd.s32 %s653, %s592
        %s655 = sld [smem:[#allocation2 + %s654]]
        %v656 = vld [vmem:[%s595 + $0x1] sm:$0xff]
        %v657 = vstv %s655
        %v658 = vmul.f32 %v657, %v656
        %v659 = vadd.f32 %v651, %v658
        %s660 = sadd.s32 %s587, 8
        %s661 = smul.u32 %s660, 128
        %s662 = sadd.s32 %s661, %s592
        %s663 = sld [smem:[#allocation2 + %s662]]
        %v664 = vstv %s663
        %v665 = vmul.f32 %v664, %v648
        %667 = vrot.lane.b32.xlu0 %v665, 127
        %v668 = vpop.permute.xlu0 %667
        %v670 = vadd.f32 %v659, %v668
        %s671 = sld [smem:[#allocation5 + %s581]]
        %v672 = vstv %s671
        %v673 = vadd.f32 %v670, %v672
        %s674 = scalar_lea.vmem %s274, 24 [#allocation7]
        %675 = vst.msk [vmem:[%s674] sm:$0xff] %vm389, %v673
        %s676 = sand.u32 %s140, 1
        %s677 = scalar_lea.sflag [#allocation3], %s676
        %s678 = sand.u32 %s140, 1
        %s679 = smul.addr %s678, 32
        %s680 = scalar_lea.vmem [#allocation7], %s679
        // Predicated region
        $region45: #{learned_downsample.1} parent=35 // pred_check
          %p681 = pneg %p150
        $region46: #{learned_downsample.1} parent=35 // pred_check_branch
          %683 = sbr.rel (%p681) target = $region48
        $region47: #{learned_downsample.1} parent=35 // pred_region
          %s684 = smul.u32 4, %s25
          %s686 = ssub.s32 512, 512
          %687 = vsyncadd %s677, %s686
          %s688 = smul.addr %s24, 4
          %s689 = sadd.s32 %s684, %s688
          %s690 = smul.addr %s689, 128
          %s691 = scalar_lea.hbm %s4, %s690
          %s692 = sshll.u32 %s680, 4
          %s693 = int_to_ptr.vmem [resolvable:$true] %s692
          %698 = dma.vmem_to_hbm [thread:$0]  %s693, 512, %s691, %s677, 128, 128, 8
        $region48: #{learned_downsample.1} parent=35 // pred_fallthru
          _
      $region36: #{learned_downsample.1} parent=5 // pred_fallthru
        _
      %p699 = scmp.le.s32.totalorder 2, %s15
      // Predicated region
      $region49: #{learned_downsample.1} parent=5 // pred_check
        %p700 = pneg %p699
      $region50: #{learned_downsample.1} parent=5 // pred_check_branch
        %702 = sbr.rel (%p700) target = $region52
      $region51: #{learned_downsample.1} parent=5 // pred_region
        %s703 = ssub.s32 %s15, 2
        // Predicated region
        $region53: #{learned_downsample.1} parent=51 // pred_check
          %p704 = pneg %p156
        $region54: #{learned_downsample.1} parent=51 // pred_check_branch
          %706 = sbr.rel (%p704) target = $region56
        $region55: #{learned_downsample.1} parent=51 // pred_region
          %s707 = sand.u32 %s141, 1
          %s708 = scalar_lea.sflag [#allocation3], %s707
          %s709 = sand.u32 %s141, 1
          %s710 = smul.addr %s709, 32
          %s711 = scalar_lea.vmem [#allocation7], %s710
          %712 = dma.done %s708, 512
        $region56: #{learned_downsample.1} parent=51 // pred_fallthru
          _
      $region52: #{learned_downsample.1} parent=5 // pred_fallthru
        _
    $region6: #{learned_downsample.1} parent=1 // loop_footer
      %s19 = sadd.s32 1, %s15
    $region7: #{learned_downsample.1} parent=1 // loop_footer_branch
      %14 = sbr.rel target = $region3
    $region8: #{learned_downsample.1} parent=1 // loop_exit
      _
    %713 = vsyncpa [#allocation3], 1
    %s714 = scalar_lea.sflag [#allocation3], 1
    %715 = vsyncpa %s714, 1
    %716 = vsyncpa [#allocation4], 1
    %s717 = scalar_lea.sflag [#allocation4], 1
    %718 = vsyncpa %s717, 1
    %719 = vsyncpa [#allocation6], 1

</llo_original>
